<compile_context>
chip_gen: v7x
topology: tpu7x:2x2x1
jax: 0.10.0
libtpu: 0.0.40
codegen_flags: <defaults>
</compile_context>

<pallas_src>
import functools

import jax
import jax.numpy as jnp
from jax import lax
from jax.experimental import pallas as pl
from jax.experimental.pallas import tpu as pltpu

VAR0 = 0.1  # variance for center offsets
VAR1 = 0.2  # variance for log-size offsets

_RANK_SUB = 32  # sublane tile height for the rank accumulation


def _match_kernel(jaccard_threshold, tgt_ref, pri_ref, loc_ref, conf_ref):
    """Per-batch matching.  tgt_ref: (T,5); pri_ref: (4,P) [cx,cy,w,h];
    outputs loc_ref: (4,P) encoded targets, conf_ref: (1,P) int32 class targets."""
    T = tgt_ref.shape[0]
    P = pri_ref.shape[1]

    tgt = tgt_ref[...]                                    # (T, 5)
    t_xmin = tgt[:, 0:1]
    t_ymin = tgt[:, 1:2]
    t_xmax = tgt[:, 2:3]
    t_ymax = tgt[:, 3:4]
    t_lab = tgt[:, 4:5]                                   # (T, 1)

    pri = pri_ref[...]                                    # (4, P)
    pcx = pri[0:1, :]
    pcy = pri[1:2, :]
    pw = pri[2:3, :]
    ph = pri[3:4, :]
    p_xmin = pcx - pw * 0.5
    p_xmax = pcx + pw * 0.5
    p_ymin = pcy - ph * 0.5
    p_ymax = pcy + ph * 0.5                               # (1, P)

    # Jaccard overlap matrix (T, P)
    iw = jnp.maximum(jnp.minimum(t_xmax, p_xmax) - jnp.maximum(t_xmin, p_xmin), 0.0)
    ih = jnp.maximum(jnp.minimum(t_ymax, p_ymax) - jnp.maximum(t_ymin, p_ymin), 0.0)
    inter = iw * ih
    area_t = (t_xmax - t_xmin) * (t_ymax - t_ymin)        # (T, 1)
    area_p = (p_xmax - p_xmin) * (p_ymax - p_ymin)        # (1, P)
    overlaps = inter / (area_t + area_p - inter)          # (T, P)

    iota_p = lax.broadcasted_iota(jnp.int32, (T, P), 1)
    iota_t = lax.broadcasted_iota(jnp.int32, (T, P), 0)

    # best prior per truth (argmax along priors)
    bp_max = jnp.max(overlaps, axis=1, keepdims=True)                         # (T, 1)
    bp_idx = jnp.min(jnp.where(overlaps == bp_max, iota_p, P), axis=1,
                     keepdims=True)                                           # (T, 1)
    # best truth per prior (argmax along truths)
    bt_max = jnp.max(overlaps, axis=0, keepdims=True)                         # (1, P)
    bt_idx = jnp.min(jnp.where(overlaps == bt_max, iota_t, T), axis=0,
                     keepdims=True)                                           # (1, P)

    # index_fill_(best_prior_idx, 2) + "best_truth_idx[best_prior_idx[j]] = j"
    forced = (iota_p == bp_idx)                                               # (T, P)
    forced_any = jnp.max(forced.astype(jnp.int32), axis=0, keepdims=True) > 0 # (1, P)
    forced_idx = jnp.max(jnp.where(forced, iota_t, -1), axis=0, keepdims=True)
    best_truth_overlap = jnp.where(forced_any, 2.0, bt_max)
    best_truth_idx = jnp.where(forced_any, forced_idx, bt_idx)                # (1, P)

    # gather matched truths via one-hot over the (small) truth axis
    onehot = (iota_t == best_truth_idx)                                       # (T, P)
    m_xmin = jnp.sum(jnp.where(onehot, t_xmin, 0.0), axis=0, keepdims=True)
    m_ymin = jnp.sum(jnp.where(onehot, t_ymin, 0.0), axis=0, keepdims=True)
    m_xmax = jnp.sum(jnp.where(onehot, t_xmax, 0.0), axis=0, keepdims=True)
    m_ymax = jnp.sum(jnp.where(onehot, t_ymax, 0.0), axis=0, keepdims=True)
    m_lab = jnp.sum(jnp.where(onehot, t_lab, 0.0), axis=0, keepdims=True)     # (1, P)

    conf = (m_lab + 1.0).astype(jnp.int32)
    conf = jnp.where(best_truth_overlap < jaccard_threshold, 0, conf)
    conf_ref[...] = conf

    # encode(matched, priors, variances)
    g_cx = ((m_xmin + m_xmax) * 0.5 - pcx) / (VAR0 * pw)
    g_cy = ((m_ymin + m_ymax) * 0.5 - pcy) / (VAR0 * ph)
    g_w = jnp.log((m_xmax - m_xmin) / pw) / VAR1
    g_h = jnp.log((m_ymax - m_ymin) / ph) / VAR1
    loc_ref[0:1, :] = g_cx
    loc_ref[1:2, :] = g_cy
    loc_ref[2:3, :] = g_w
    loc_ref[3:4, :] = g_h


def _loss_kernel(negpos_ratio, num_valid, locp_ref, loct_ref, conf_ref, ct_ref,
                 out_ref):
    """One batch element per grid step.
    locp/loct: (4,P); conf: (C,P); ct: (1,P) int32.
    out: (8,128) with sublane 0 = loc partial sum, 1 = conf partial sum,
    2 = num_pos (all broadcast along lanes)."""
    C, P = conf_ref.shape

    ct = ct_ref[...]                                       # (1, P) int32
    iota_p = lax.broadcasted_iota(jnp.int32, (1, P), 1)
    valid = iota_p < num_valid                             # mask padded priors
    pos = ct > 0                                           # padded priors are bg
    num_pos = jnp.sum(pos.astype(jnp.float32), keepdims=True)       # (1, 1)

    # ---- localization loss: smooth L1 over positive priors ----
    diff = locp_ref[...] - loct_ref[...]                   # (4, P)
    ad = jnp.abs(diff)
    sl1 = jnp.where(ad < 1.0, 0.5 * diff * diff, ad - 0.5)
    loc_sum = jnp.sum(jnp.where(pos, sl1, 0.0), keepdims=True)       # (1, 1)

    # ---- per-prior cross entropy, single pass in lane-dense (C,P) layout ----
    lg = conf_ref[...]                                     # (C, P)
    m = jnp.max(lg, axis=0, keepdims=True)                 # (1, P)
    lse = m + jnp.log(jnp.sum(jnp.exp(lg - m), axis=0, keepdims=True))
    iota_c = lax.broadcasted_iota(jnp.int32, (C, P), 0)
    gath = jnp.sum(jnp.where(iota_c == ct, lg, 0.0), axis=0, keepdims=True)
    ce = lse - gath                                        # (1, P), >= 0
    # padded priors: never rank above a real prior, contribute nothing.
    ce = jnp.where(valid, ce, -1e30)

    # ---- hard negative mining: rank by descending CE, computed in tiles ----
    # rank[p] = #{j : ce[j] > ce[p]}.  Each 128-lane chunk of ce is moved onto
    # sublanes via a diagonal mask + lane reduce, then compared in (_RANK_SUB, P)
    # tiles so no (P,P) intermediate is ever materialized.
    diag = (lax.broadcasted_iota(jnp.int32, (128, 128), 1) ==
            lax.broadcasted_iota(jnp.int32, (128, 128), 0))           # (128,128)
    rank = jnp.zeros((1, P), jnp.float32)
    for c in range(P // 128):
        chunk = ce[:, c * 128:(c + 1) * 128]                          # (1, 128)
        col = jnp.sum(jnp.where(diag, chunk, 0.0), axis=1,
                      keepdims=True)                                  # (128, 1)
        for s in range(0, 128, _RANK_SUB):
            sub = col[s:s + _RANK_SUB, :]                             # (SUB, 1)
            rank = rank + jnp.sum((sub > ce).astype(jnp.float32),
                                  axis=0, keepdims=True)              # (1, P)

    num_neg = jnp.minimum(num_pos * negpos_ratio, float(num_valid))   # (1, 1)
    neg = jnp.logical_and(rank < num_neg, valid)
    sel = jnp.logical_or(pos, neg)
    conf_sum = jnp.sum(jnp.where(sel, ce, 0.0), keepdims=True)        # (1, 1)

    rid = lax.broadcasted_iota(jnp.int32, (8, 128), 0)
    out_ref[...] = jnp.where(rid == 0, loc_sum,
                   jnp.where(rid == 1, conf_sum,
                   jnp.where(rid == 2, num_pos, 0.0)))


def multibox_loss(loc_data, conf_data, default_boxes, targets,
                  jaccard_threshold=0.5, negpos_ratio=3):
    B, P, _ = loc_data.shape
    C = conf_data.shape[2]
    T = targets.shape[1]

    # ---- pad the prior axis to a multiple of 128 (lane-dense everywhere) ----
    P_pad = ((P + 127) // 128) * 128
    pad = P_pad - P
    if pad:
        loc_data = jnp.pad(loc_data, ((0, 0), (0, pad), (0, 0)))
        conf_data = jnp.pad(conf_data, ((0, 0), (0, pad), (0, 0)))
        # padded priors: centered far outside [0,1] with unit size -> zero
        # jaccard overlap with any truth, finite encode, background class.
        pad_boxes = jnp.concatenate(
            [jnp.full((pad, 2), 2.0, default_boxes.dtype),
             jnp.ones((pad, 2), default_boxes.dtype)], axis=1)
        default_boxes = jnp.concatenate([default_boxes, pad_boxes], axis=0)

    priors_t = jnp.transpose(default_boxes, (1, 0))        # (4, P_pad)

    # ---- kernel 1: per-batch matching / target encoding ----
    match_fn = pl.pallas_call(
        functools.partial(_match_kernel, jaccard_threshold),
        grid=(B,),
        in_specs=[
            pl.BlockSpec((None, T, 5), lambda b: (b, 0, 0)),    # targets
            pl.BlockSpec((4, P_pad), lambda b: (0, 0)),         # priors (4,P)
        ],
        out_specs=[
            pl.BlockSpec((None, 4, P_pad), lambda b: (b, 0, 0)),  # loc_t
            pl.BlockSpec((None, 1, P_pad), lambda b: (b, 0, 0)),  # conf_t
        ],
        out_shape=[
            jax.ShapeDtypeStruct((B, 4, P_pad), jnp.float32),
            jax.ShapeDtypeStruct((B, 1, P_pad), jnp.int32),
        ],
        compiler_params=pltpu.CompilerParams(dimension_semantics=("parallel",)),
    )
    loc_t_t, conf_t = match_fn(targets, priors_t)

    # single lane-dense conf layout; loc predictions as (coords x priors)
    loc_p_t = jnp.transpose(loc_data, (0, 2, 1))           # (B, 4, P_pad)
    conf_cp = jnp.transpose(conf_data, (0, 2, 1))          # (B, C, P_pad)

    # ---- kernel 2: per-batch losses (grid over B, parallel for megacore) ----
    loss_fn = pl.pallas_call(
        functools.partial(_loss_kernel, negpos_ratio, P),
        grid=(B,),
        in_specs=[
            pl.BlockSpec((None, 4, P_pad), lambda b: (b, 0, 0)),   # loc preds
            pl.BlockSpec((None, 4, P_pad), lambda b: (b, 0, 0)),   # loc targets
            pl.BlockSpec((None, C, P_pad), lambda b: (b, 0, 0)),   # conf logits
            pl.BlockSpec((None, 1, P_pad), lambda b: (b, 0, 0)),   # conf targets
        ],
        out_specs=pl.BlockSpec((None, 8, 128), lambda b: (b, 0, 0)),
        out_shape=jax.ShapeDtypeStruct((B, 8, 128), jnp.float32),
        compiler_params=pltpu.CompilerParams(
            dimension_semantics=("parallel",),
            vmem_limit_bytes=48 * 1024 * 1024),
    )
    partials = loss_fn(loc_p_t, loc_t_t, conf_cp, conf_t)

    loc_sum = jnp.sum(partials[:, 0, 0])
    conf_sum = jnp.sum(partials[:, 1, 0])
    n_pos = jnp.sum(partials[:, 2, 0])
    return loc_sum / n_pos, conf_sum / n_pos


if __name__ == "__main__":
    key = jax.random.PRNGKey(0)
    k1, k2, k3, k4, k5, k6 = jax.random.split(key, 6)

    B, P, C, T = 2, 200, 8, 4   # batch, num_default_boxes, num_classes, num_objs

    loc_data = jax.random.normal(k1, (B, P, 4), jnp.float32) * 0.1
    conf_data = jax.random.normal(k2, (B, P, C), jnp.float32)

    # default boxes in (cx, cy, w, h)
    db_cxy = jax.random.uniform(k3, (P, 2), jnp.float32, minval=0.1, maxval=0.9)
    db_wh = jax.random.uniform(k4, (P, 2), jnp.float32, minval=0.05, maxval=0.3)
    default_boxes = jnp.concatenate([db_cxy, db_wh], axis=1)   # (P, 4)

    # ground truth: corner-form boxes + label (last column), labels in [0, C-2]
    t_cxy = jax.random.uniform(k5, (B, T, 2), jnp.float32, minval=0.25, maxval=0.75)
    t_wh = jax.random.uniform(k6, (B, T, 2), jnp.float32, minval=0.1, maxval=0.4)
    t_min = jnp.clip(t_cxy - t_wh * 0.5, 0.0, 1.0)
    t_max = jnp.clip(t_cxy + t_wh * 0.5, 0.0, 1.0)
    labels = (jnp.arange(B * T).reshape(B, T, 1) % (C - 1)).astype(jnp.float32)
    targets = jnp.concatenate([t_min, t_max, labels], axis=2)  # (B, T, 5)

    loss_loc, loss_conf = multibox_loss(loc_data, conf_data, default_boxes, targets,
                                        jaccard_threshold=0.5, negpos_ratio=3)
    jax.block_until_ready((loss_loc, loss_conf))

    assert jnp.isfinite(loss_loc) and jnp.isfinite(loss_conf)
    print("KERNEL_OK")
</pallas_src>

<mosaic_0001>
module attributes {stable_mosaic.version = 11 : i64} {
  func.func @_match_kernel(%arg0: i32, %arg1: memref<1x4x5xf32, #tpu.memory_space<vmem>>, %arg2: memref<4x256xf32, #tpu.memory_space<vmem>>, %arg3: memref<1x4x256xf32, #tpu.memory_space<vmem>>, %arg4: memref<1x1x256xi32, #tpu.memory_space<vmem>>) attributes {dimension_semantics = [#tpu.dimension_semantics<parallel>], iteration_bounds = array<i64: 2>, scalar_prefetch = 0 : i64, scratch_operands = 0 : i64, tpu.core_type = #tpu.core_type<tc>, window_params = [{transform_indices = @transform_0, window_bounds = array<i64: 1, 4, 5>}, {pipeline_mode = #tpu.pipeline_mode<synchronous>, transform_indices = @transform_1, window_bounds = array<i64: 4, 256>}, {transform_indices = @transform_2, window_bounds = array<i64: 1, 4, 256>}, {transform_indices = @transform_3, window_bounds = array<i64: 1, 1, 256>}]} {
    %c0 = arith.constant 0 : index
    %c0_0 = arith.constant 0 : index
    %c0_1 = arith.constant 0 : index
    %0 = vector.load %arg1[%c0, %c0_0, %c0_1] : memref<1x4x5xf32, #tpu.memory_space<vmem>>, vector<1x4x5xf32>
    %1 = vector.shape_cast %0 : vector<1x4x5xf32> to vector<4x5xf32>
    %2 = vector.extract_strided_slice %1 {offsets = [0, 0], sizes = [4, 1], strides = [1, 1]} : vector<4x5xf32> to vector<4x1xf32>
    %3 = vector.extract_strided_slice %1 {offsets = [0, 1], sizes = [4, 1], strides = [1, 1]} : vector<4x5xf32> to vector<4x1xf32>
    %4 = vector.extract_strided_slice %1 {offsets = [0, 2], sizes = [4, 1], strides = [1, 1]} : vector<4x5xf32> to vector<4x1xf32>
    %5 = vector.extract_strided_slice %1 {offsets = [0, 3], sizes = [4, 1], strides = [1, 1]} : vector<4x5xf32> to vector<4x1xf32>
    %6 = vector.extract_strided_slice %1 {offsets = [0, 4], sizes = [4, 1], strides = [1, 1]} : vector<4x5xf32> to vector<4x1xf32>
    %c0_2 = arith.constant 0 : index
    %c0_3 = arith.constant 0 : index
    %7 = vector.load %arg2[%c0_2, %c0_3] : memref<4x256xf32, #tpu.memory_space<vmem>>, vector<4x256xf32>
    %8 = vector.extract_strided_slice %7 {offsets = [0, 0], sizes = [1, 256], strides = [1, 1]} : vector<4x256xf32> to vector<1x256xf32>
    %9 = vector.extract_strided_slice %7 {offsets = [1, 0], sizes = [1, 256], strides = [1, 1]} : vector<4x256xf32> to vector<1x256xf32>
    %10 = vector.extract_strided_slice %7 {offsets = [2, 0], sizes = [1, 256], strides = [1, 1]} : vector<4x256xf32> to vector<1x256xf32>
    %11 = vector.extract_strided_slice %7 {offsets = [3, 0], sizes = [1, 256], strides = [1, 1]} : vector<4x256xf32> to vector<1x256xf32>
    %cst = arith.constant 5.000000e-01 : f32
    %12 = vector.broadcast %cst : f32 to vector<1x256xf32>
    %13 = arith.mulf %10, %12 : vector<1x256xf32>
    %14 = arith.subf %8, %13 : vector<1x256xf32>
    %cst_4 = arith.constant 5.000000e-01 : f32
    %15 = vector.broadcast %cst_4 : f32 to vector<1x256xf32>
    %16 = arith.mulf %10, %15 : vector<1x256xf32>
    %17 = arith.addf %8, %16 : vector<1x256xf32>
    %cst_5 = arith.constant 5.000000e-01 : f32
    %18 = vector.broadcast %cst_5 : f32 to vector<1x256xf32>
    %19 = arith.mulf %11, %18 : vector<1x256xf32>
    %20 = arith.subf %9, %19 : vector<1x256xf32>
    %cst_6 = arith.constant 5.000000e-01 : f32
    %21 = vector.broadcast %cst_6 : f32 to vector<1x256xf32>
    %22 = arith.mulf %11, %21 : vector<1x256xf32>
    %23 = arith.addf %9, %22 : vector<1x256xf32>
    %24 = vector.broadcast %4 : vector<4x1xf32> to vector<4x256xf32>
    %25 = vector.broadcast %17 : vector<1x256xf32> to vector<4x256xf32>
    %26 = arith.minimumf %24, %25 : vector<4x256xf32>
    %27 = vector.broadcast %2 : vector<4x1xf32> to vector<4x256xf32>
    %28 = vector.broadcast %14 : vector<1x256xf32> to vector<4x256xf32>
    %29 = arith.maximumf %27, %28 : vector<4x256xf32>
    %30 = arith.subf %26, %29 : vector<4x256xf32>
    %cst_7 = arith.constant 0.000000e+00 : f32
    %31 = vector.broadcast %cst_7 : f32 to vector<4x256xf32>
    %32 = arith.maximumf %30, %31 : vector<4x256xf32>
    %33 = vector.broadcast %5 : vector<4x1xf32> to vector<4x256xf32>
    %34 = vector.broadcast %23 : vector<1x256xf32> to vector<4x256xf32>
    %35 = arith.minimumf %33, %34 : vector<4x256xf32>
    %36 = vector.broadcast %3 : vector<4x1xf32> to vector<4x256xf32>
    %37 = vector.broadcast %20 : vector<1x256xf32> to vector<4x256xf32>
    %38 = arith.maximumf %36, %37 : vector<4x256xf32>
    %39 = arith.subf %35, %38 : vector<4x256xf32>
    %cst_8 = arith.constant 0.000000e+00 : f32
    %40 = vector.broadcast %cst_8 : f32 to vector<4x256xf32>
    %41 = arith.maximumf %39, %40 : vector<4x256xf32>
    %42 = arith.mulf %32, %41 : vector<4x256xf32>
    %43 = arith.subf %4, %2 : vector<4x1xf32>
    %44 = arith.subf %5, %3 : vector<4x1xf32>
    %45 = arith.mulf %43, %44 : vector<4x1xf32>
    %46 = arith.subf %17, %14 : vector<1x256xf32>
    %47 = arith.subf %23, %20 : vector<1x256xf32>
    %48 = arith.mulf %46, %47 : vector<1x256xf32>
    %49 = vector.broadcast %45 : vector<4x1xf32> to vector<4x256xf32>
    %50 = vector.broadcast %48 : vector<1x256xf32> to vector<4x256xf32>
    %51 = arith.addf %49, %50 : vector<4x256xf32>
    %52 = arith.subf %51, %42 : vector<4x256xf32>
    %53 = arith.divf %42, %52 : vector<4x256xf32>
    %54 = tpu.iota {dimensions = array<i32: 1>} : vector<4x256xi32>
    %55 = tpu.iota {dimensions = array<i32: 0>} : vector<4x256xi32>
    %cst_9 = arith.constant dense<0xFF800000> : vector<4xf32>
    %56 = vector.multi_reduction <maximumf>, %53, %cst_9 [1] : vector<4x256xf32> to vector<4xf32>
    %57 = vector.shape_cast %56 : vector<4xf32> to vector<4x1xf32>
    %58 = vector.broadcast %57 : vector<4x1xf32> to vector<4x256xf32>
    %59 = arith.cmpf oeq, %53, %58 : vector<4x256xf32>
    %c256_i32 = arith.constant 256 : i32
    %60 = vector.broadcast %c256_i32 : i32 to vector<4x256xi32>
    %61 = arith.select %59, %54, %60 : vector<4x256xi1>, vector<4x256xi32>
    %cst_10 = arith.constant dense<2147483647> : vector<4xi32>
    %62 = vector.multi_reduction <minsi>, %61, %cst_10 [1] : vector<4x256xi32> to vector<4xi32>
    %63 = vector.shape_cast %62 : vector<4xi32> to vector<4x1xi32>
    %cst_11 = arith.constant dense<0xFF800000> : vector<256xf32>
    %64 = vector.multi_reduction <maximumf>, %53, %cst_11 [0] : vector<4x256xf32> to vector<256xf32>
    %65 = vector.shape_cast %64 : vector<256xf32> to vector<1x256xf32>
    %66 = vector.broadcast %65 : vector<1x256xf32> to vector<4x256xf32>
    %67 = arith.cmpf oeq, %53, %66 : vector<4x256xf32>
    %c4_i32 = arith.constant 4 : i32
    %68 = vector.broadcast %c4_i32 : i32 to vector<4x256xi32>
    %69 = arith.select %67, %55, %68 : vector<4x256xi1>, vector<4x256xi32>
    %cst_12 = arith.constant dense<2147483647> : vector<256xi32>
    %70 = vector.multi_reduction <minsi>, %69, %cst_12 [0] : vector<4x256xi32> to vector<256xi32>
    %71 = vector.shape_cast %70 : vector<256xi32> to vector<1x256xi32>
    %72 = vector.broadcast %63 : vector<4x1xi32> to vector<4x256xi32>
    %73 = arith.cmpi eq, %54, %72 : vector<4x256xi32>
    %74 = arith.extui %73 : vector<4x256xi1> to vector<4x256xi32>
    %cst_13 = arith.constant dense<-2147483648> : vector<256xi32>
    %75 = vector.multi_reduction <maxsi>, %74, %cst_13 [0] : vector<4x256xi32> to vector<256xi32>
    %76 = vector.shape_cast %75 : vector<256xi32> to vector<1x256xi32>
    %c0_i32 = arith.constant 0 : i32
    %77 = vector.broadcast %c0_i32 : i32 to vector<1x256xi32>
    %78 = arith.cmpi sgt, %76, %77 : vector<1x256xi32>
    %c-1_i32 = arith.constant -1 : i32
    %79 = vector.broadcast %c-1_i32 : i32 to vector<4x256xi32>
    %80 = arith.select %73, %55, %79 : vector<4x256xi1>, vector<4x256xi32>
    %cst_14 = arith.constant dense<-2147483648> : vector<256xi32>
    %81 = vector.multi_reduction <maxsi>, %80, %cst_14 [0] : vector<4x256xi32> to vector<256xi32>
    %82 = vector.shape_cast %81 : vector<256xi32> to vector<1x256xi32>
    %cst_15 = arith.constant 2.000000e+00 : f32
    %83 = vector.broadcast %cst_15 : f32 to vector<1x256xf32>
    %84 = arith.select %78, %83, %65 : vector<1x256xi1>, vector<1x256xf32>
    %85 = arith.select %78, %82, %71 : vector<1x256xi1>, vector<1x256xi32>
    %86 = vector.broadcast %85 : vector<1x256xi32> to vector<4x256xi32>
    %87 = arith.cmpi eq, %55, %86 : vector<4x256xi32>
    %cst_16 = arith.constant 0.000000e+00 : f32
    %88 = vector.shape_cast %2 : vector<4x1xf32> to vector<4x1xf32>
    %89 = vector.broadcast %88 : vector<4x1xf32> to vector<4x256xf32>
    %90 = vector.broadcast %cst_16 : f32 to vector<4x256xf32>
    %91 = arith.select %87, %89, %90 : vector<4x256xi1>, vector<4x256xf32>
    %cst_17 = arith.constant dense<0.000000e+00> : vector<256xf32>
    %92 = vector.multi_reduction <add>, %91, %cst_17 [0] : vector<4x256xf32> to vector<256xf32>
    %93 = vector.shape_cast %92 : vector<256xf32> to vector<1x256xf32>
    %cst_18 = arith.constant 0.000000e+00 : f32
    %94 = vector.shape_cast %3 : vector<4x1xf32> to vector<4x1xf32>
    %95 = vector.broadcast %94 : vector<4x1xf32> to vector<4x256xf32>
    %96 = vector.broadcast %cst_18 : f32 to vector<4x256xf32>
    %97 = arith.select %87, %95, %96 : vector<4x256xi1>, vector<4x256xf32>
    %cst_19 = arith.constant dense<0.000000e+00> : vector<256xf32>
    %98 = vector.multi_reduction <add>, %97, %cst_19 [0] : vector<4x256xf32> to vector<256xf32>
    %99 = vector.shape_cast %98 : vector<256xf32> to vector<1x256xf32>
    %cst_20 = arith.constant 0.000000e+00 : f32
    %100 = vector.shape_cast %4 : vector<4x1xf32> to vector<4x1xf32>
    %101 = vector.broadcast %100 : vector<4x1xf32> to vector<4x256xf32>
    %102 = vector.broadcast %cst_20 : f32 to vector<4x256xf32>
    %103 = arith.select %87, %101, %102 : vector<4x256xi1>, vector<4x256xf32>
    %cst_21 = arith.constant dense<0.000000e+00> : vector<256xf32>
    %104 = vector.multi_reduction <add>, %103, %cst_21 [0] : vector<4x256xf32> to vector<256xf32>
    %105 = vector.shape_cast %104 : vector<256xf32> to vector<1x256xf32>
    %cst_22 = arith.constant 0.000000e+00 : f32
    %106 = vector.shape_cast %5 : vector<4x1xf32> to vector<4x1xf32>
    %107 = vector.broadcast %106 : vector<4x1xf32> to vector<4x256xf32>
    %108 = vector.broadcast %cst_22 : f32 to vector<4x256xf32>
    %109 = arith.select %87, %107, %108 : vector<4x256xi1>, vector<4x256xf32>
    %cst_23 = arith.constant dense<0.000000e+00> : vector<256xf32>
    %110 = vector.multi_reduction <add>, %109, %cst_23 [0] : vector<4x256xf32> to vector<256xf32>
    %111 = vector.shape_cast %110 : vector<256xf32> to vector<1x256xf32>
    %cst_24 = arith.constant 0.000000e+00 : f32
    %112 = vector.shape_cast %6 : vector<4x1xf32> to vector<4x1xf32>
    %113 = vector.broadcast %112 : vector<4x1xf32> to vector<4x256xf32>
    %114 = vector.broadcast %cst_24 : f32 to vector<4x256xf32>
    %115 = arith.select %87, %113, %114 : vector<4x256xi1>, vector<4x256xf32>
    %cst_25 = arith.constant dense<0.000000e+00> : vector<256xf32>
    %116 = vector.multi_reduction <add>, %115, %cst_25 [0] : vector<4x256xf32> to vector<256xf32>
    %117 = vector.shape_cast %116 : vector<256xf32> to vector<1x256xf32>
    %cst_26 = arith.constant 1.000000e+00 : f32
    %118 = vector.broadcast %cst_26 : f32 to vector<1x256xf32>
    %119 = arith.addf %117, %118 : vector<1x256xf32>
    %120 = arith.fptosi %119 : vector<1x256xf32> to vector<1x256xi32>
    %cst_27 = arith.constant 5.000000e-01 : f32
    %121 = vector.broadcast %cst_27 : f32 to vector<1x256xf32>
    %122 = arith.cmpf olt, %84, %121 : vector<1x256xf32>
    %c0_i32_28 = arith.constant 0 : i32
    %123 = vector.broadcast %c0_i32_28 : i32 to vector<1x256xi32>
    %124 = arith.select %122, %123, %120 : vector<1x256xi1>, vector<1x256xi32>
    %c0_29 = arith.constant 0 : index
    %c0_30 = arith.constant 0 : index
    %c0_31 = arith.constant 0 : index
    %125 = vector.load %arg4[%c0_29, %c0_30, %c0_31] : memref<1x1x256xi32, #tpu.memory_space<vmem>>, vector<1x1x256xi32>
    %126 = vector.shape_cast %125 : vector<1x1x256xi32> to vector<1x256xi32>
    %127 = vector.shape_cast %124 : vector<1x256xi32> to vector<1x1x256xi32>
    tpu.vector_store %arg4[%c0_29, %c0_30, %c0_31], %127 {strides = array<i32>} : memref<1x1x256xi32, #tpu.memory_space<vmem>>, vector<1x1x256xi32>,
    %128 = arith.addf %93, %105 : vector<1x256xf32>
    %cst_32 = arith.constant 5.000000e-01 : f32
    %129 = vector.broadcast %cst_32 : f32 to vector<1x256xf32>
    %130 = arith.mulf %128, %129 : vector<1x256xf32>
    %131 = arith.subf %130, %8 : vector<1x256xf32>
    %cst_33 = arith.constant 1.000000e-01 : f32
    %132 = vector.broadcast %cst_33 : f32 to vector<1x256xf32>
    %133 = arith.mulf %132, %10 : vector<1x256xf32>
    %134 = arith.divf %131, %133 : vector<1x256xf32>
    %135 = arith.addf %99, %111 : vector<1x256xf32>
    %cst_34 = arith.constant 5.000000e-01 : f32
    %136 = vector.broadcast %cst_34 : f32 to vector<1x256xf32>
    %137 = arith.mulf %135, %136 : vector<1x256xf32>
    %138 = arith.subf %137, %9 : vector<1x256xf32>
    %cst_35 = arith.constant 1.000000e-01 : f32
    %139 = vector.broadcast %cst_35 : f32 to vector<1x256xf32>
    %140 = arith.mulf %139, %11 : vector<1x256xf32>
    %141 = arith.divf %138, %140 : vector<1x256xf32>
    %142 = arith.subf %105, %93 : vector<1x256xf32>
    %143 = arith.divf %142, %10 : vector<1x256xf32>
    %144 = math.log %143 : vector<1x256xf32>
    %cst_36 = arith.constant 2.000000e-01 : f32
    %145 = vector.broadcast %cst_36 : f32 to vector<1x256xf32>
    %146 = arith.divf %144, %145 : vector<1x256xf32>
    %147 = arith.subf %111, %99 : vector<1x256xf32>
    %148 = arith.divf %147, %11 : vector<1x256xf32>
    %149 = math.log %148 : vector<1x256xf32>
    %cst_37 = arith.constant 2.000000e-01 : f32
    %150 = vector.broadcast %cst_37 : f32 to vector<1x256xf32>
    %151 = arith.divf %149, %150 : vector<1x256xf32>
    %c0_38 = arith.constant 0 : index
    %c0_39 = arith.constant 0 : index
    %c0_40 = arith.constant 0 : index
    %152 = vector.load %arg3[%c0_38, %c0_39, %c0_40] : memref<1x4x256xf32, #tpu.memory_space<vmem>>, vector<1x1x256xf32>
    %153 = vector.shape_cast %152 : vector<1x1x256xf32> to vector<1x256xf32>
    %154 = vector.shape_cast %134 : vector<1x256xf32> to vector<1x1x256xf32>
    tpu.vector_store %arg3[%c0_38, %c0_39, %c0_40], %154 {strides = array<i32>} : memref<1x4x256xf32, #tpu.memory_space<vmem>>, vector<1x1x256xf32>,
    %c0_41 = arith.constant 0 : index
    %c1 = arith.constant 1 : index
    %c0_42 = arith.constant 0 : index
    %155 = vector.load %arg3[%c0_41, %c1, %c0_42] : memref<1x4x256xf32, #tpu.memory_space<vmem>>, vector<1x1x256xf32>
    %156 = vector.shape_cast %155 : vector<1x1x256xf32> to vector<1x256xf32>
    %157 = vector.shape_cast %141 : vector<1x256xf32> to vector<1x1x256xf32>
    tpu.vector_store %arg3[%c0_41, %c1, %c0_42], %157 {strides = array<i32>} : memref<1x4x256xf32, #tpu.memory_space<vmem>>, vector<1x1x256xf32>,
    %c0_43 = arith.constant 0 : index
    %c2 = arith.constant 2 : index
    %c0_44 = arith.constant 0 : index
    %158 = vector.load %arg3[%c0_43, %c2, %c0_44] : memref<1x4x256xf32, #tpu.memory_space<vmem>>, vector<1x1x256xf32>
    %159 = vector.shape_cast %158 : vector<1x1x256xf32> to vector<1x256xf32>
    %160 = vector.shape_cast %146 : vector<1x256xf32> to vector<1x1x256xf32>
    tpu.vector_store %arg3[%c0_43, %c2, %c0_44], %160 {strides = array<i32>} : memref<1x4x256xf32, #tpu.memory_space<vmem>>, vector<1x1x256xf32>,
    %c0_45 = arith.constant 0 : index
    %c3 = arith.constant 3 : index
    %c0_46 = arith.constant 0 : index
    %161 = vector.load %arg3[%c0_45, %c3, %c0_46] : memref<1x4x256xf32, #tpu.memory_space<vmem>>, vector<1x1x256xf32>
    %162 = vector.shape_cast %161 : vector<1x1x256xf32> to vector<1x256xf32>
    %163 = vector.shape_cast %151 : vector<1x256xf32> to vector<1x1x256xf32>
    tpu.vector_store %arg3[%c0_45, %c3, %c0_46], %163 {strides = array<i32>} : memref<1x4x256xf32, #tpu.memory_space<vmem>>, vector<1x1x256xf32>,
    return
  }
  func.func @transform_0(%arg0: i32) -> (i32, i32, i32) {
    %c0_i32 = arith.constant 0 : i32
    %c0_i32_0 = arith.constant 0 : i32
    %c0_i32_1 = arith.constant 0 : i32
    return %arg0, %c0_i32, %c0_i32_0 : i32, i32, i32
  }
  func.func @transform_1(%arg0: i32) -> (i32, i32) {
    %c0_i32 = arith.constant 0 : i32
    %c0_i32_0 = arith.constant 0 : i32
    %c0_i32_1 = arith.constant 0 : i32
    return %c0_i32, %c0_i32_0 : i32, i32
  }
  func.func @transform_2(%arg0: i32) -> (i32, i32, i32) {
    %c0_i32 = arith.constant 0 : i32
    %c0_i32_0 = arith.constant 0 : i32
    %c0_i32_1 = arith.constant 0 : i32
    return %arg0, %c0_i32, %c0_i32_0 : i32, i32, i32
  }
  func.func @transform_3(%arg0: i32) -> (i32, i32, i32) {
    %c0_i32 = arith.constant 0 : i32
    %c0_i32_0 = arith.constant 0 : i32
    %c0_i32_1 = arith.constant 0 : i32
    return %arg0, %c0_i32, %c0_i32_0 : i32, i32, i32
  }
}

</mosaic_0001>

<llo_original>
// kernel: tpu_custom_call.1
$region0: #{tpu_custom_call.1}
  #allocation0 [shape = 'u32[]', space=smem, size = 0x4, offset = 0x4, fixed_abs, tag = 'smem constant byte address 0x4 - core index']
  #allocation1 [shape = 'u32[144,128]{1,0:T(1,128)}', space=vmem, size = 0x12000, scoped, tag = 'internal scratch']
  %s0 = inlined_call_operand.hbm [shape: f32[2,4,5], index: 0, kind: input, shape index: {}]
  %s1 = inlined_call_operand.hbm [shape: f32[4,256], index: 1, kind: input, shape index: {}]
  %s2 = inlined_call_operand.hbm [shape: f32[2,4,256], index: 2, kind: output, shape index: {0}]
  %s3 = inlined_call_operand.hbm [shape: s32[2,1,256], index: 3, kind: output, shape index: {1}]
  %4 = xla_tuple %s2, %s3
  %s5 = sld [smem:[#allocation0]]
  $region57: #{tpu_custom_call.1} parent=0
    _
  %s7 = ssub.s32 1, %s5
  %s8 = scalar_select 0, %s7, %s5
  $region1: #{tpu_custom_call.1} parent=0
    #allocation2 [shape = 'u8[4096]{0}', space=vmem, size = 0x1000, scoped, tag = 'input window, operand 0']
    #allocation3 [shape = 's32[2]{0}', space=sflag, size = 0x8, scoped, tag = 'scoped memory for tpu_custom_call.1']
    #allocation4 [shape = 's32[2]{0}', space=sflag, size = 0x8, scoped, tag = 'scoped memory for tpu_custom_call.1']
    #allocation5 [shape = 'u8[4096]{0}', space=vmem, size = 0x1000, scoped, tag = 'input window, operand 1, single buffered']
    #allocation6 [shape = 's32[1]{0}', space=sflag, size = 0x4, scoped, tag = 'scoped memory for tpu_custom_call.1']
    #allocation7 [shape = 'u8[8192]{0}', space=vmem, size = 0x2000, scoped, tag = 'output window, operand 0']
    #allocation8 [shape = 'u8[2048]{0}', space=vmem, size = 0x800, scoped, tag = 'output window, operand 1']
    #allocation9 [shape = 's32[2]{0}', space=sflag, size = 0x8, scoped, tag = 'scoped memory for tpu_custom_call.1']
    %9 = vsyncpa [#allocation3], 0
    %s10 = scalar_lea.sflag [#allocation3], 1
    %11 = vsyncpa %s10, 0
    %12 = vsyncpa [#allocation6], 0
    %13 = vsyncpa [#allocation4], 0
    %s14 = scalar_lea.sflag [#allocation4], 1
    %15 = vsyncpa %s14, 0
    %16 = vsyncpa [#allocation9], 0
    %s17 = scalar_lea.sflag [#allocation9], 1
    %18 = vsyncpa %s17, 0
    loop: start=0, step=1, limit=4
    $region2: #{tpu_custom_call.1} parent=1 // loop_pre_header
      _
    $region3: #{tpu_custom_call.1} parent=1 // loop_header
      %s20 = sphi 0, %s24
      %p21 = scmp.ge.s32.totalorder %s20, 4
      %s30 = sphi 0, %s32
      %s33 = sphi 0, %s30
      %s34 = sphi 0, %s33
      %s50 = sphi 0, %s34
      %s54 = sphi 0, %s54
      %s56 = sphi 0, %s54
      %s57 = sphi 0, %s56
      %s71 = sphi 0, %s57
      %s77 = sphi 0, %s79
      %s80 = sphi 0, %s77
      %s81 = sphi 0, %s80
      %s97 = sphi 0, %s81
      %s103 = sphi 0, %s105
      %s106 = sphi 0, %s103
      %s107 = sphi 0, %s106
      %s123 = sphi 0, %s107
    $region4: #{tpu_custom_call.1} parent=1 // loop_header_branch
      %23 = sbr.rel (%p21) target = $region8
    $region5: #{tpu_custom_call.1} parent=1 // loop_body
      %s25 = ssub.s32 %s20, 1
      %s26 = ssub.s32 %s20, 2
      %s27 = sadd.s32 %s20, 1
      %s28 = ssub.s32 %s20, %s27
      %p29 = scmp.eq.s32.totalorder %s28, 0
      %s31 = sadd.s32 %s30, 1
      %s32 = scalar_select %p29, %s30, %s31
      %p35 = pneg %p29
      %p36 = scmp.eq.s32.totalorder %s20, 1
      %p37 = por %p35, %p36
      %p38 = scmp.ne.s32.totalorder %s30, %s33
      %p39 = scmp.eq.s32.totalorder %s20, 0
      %p40 = por %p38, %p39
      %p41 = scmp.ne.s32.totalorder %s30, %s33
      %p42 = scmp.eq.s32.totalorder %s25, 1
      %p43 = por %p41, %p42
      %p44 = scmp.ne.s32.totalorder %s33, %s34
      %p45 = scmp.eq.s32.totalorder %s25, 0
      %p46 = por %p44, %p45
      %p47 = scmp.ne.s32.totalorder %s33, %s34
      %p48 = scmp.eq.s32.totalorder %s26, 1
      %p49 = por %p47, %p48
      %p51 = scmp.ne.s32.totalorder %s34, %s50
      %p52 = scmp.eq.s32.totalorder %s26, 0
      %p53 = por %p51, %p52
      %s55 = sadd.s32 %s54, 1
      %p58 = scmp.eq.s32.totalorder %s20, 1
      %p59 = scmp.ne.s32.totalorder %s54, %s56
      %p60 = scmp.eq.s32.totalorder %s20, 0
      %p61 = por %p59, %p60
      %p62 = scmp.ne.s32.totalorder %s54, %s56
      %p63 = scmp.eq.s32.totalorder %s25, 1
      %p64 = por %p62, %p63
      %p65 = scmp.ne.s32.totalorder %s56, %s57
      %p66 = scmp.eq.s32.totalorder %s25, 0
      %p67 = por %p65, %p66
      %p68 = scmp.ne.s32.totalorder %s56, %s57
      %p69 = scmp.eq.s32.totalorder %s26, 1
      %p70 = por %p68, %p69
      %p72 = scmp.ne.s32.totalorder %s57, %s71
      %p73 = scmp.eq.s32.totalorder %s26, 0
      %p74 = por %p72, %p73
      %s75 = ssub.s32 %s20, %s27
      %p76 = scmp.eq.s32.totalorder %s75, 0
      %s78 = sadd.s32 %s77, 1
      %s79 = scalar_select %p76, %s77, %s78
      %p82 = pneg %p76
      %p83 = scmp.eq.s32.totalorder %s20, 1
      %p84 = por %p82, %p83
      %p85 = scmp.ne.s32.totalorder %s77, %s80
      %p86 = scmp.eq.s32.totalorder %s20, 0
      %p87 = por %p85, %p86
      %p88 = scmp.ne.s32.totalorder %s77, %s80
      %p89 = scmp.eq.s32.totalorder %s25, 1
      %p90 = por %p88, %p89
      %p91 = scmp.ne.s32.totalorder %s80, %s81
      %p92 = scmp.eq.s32.totalorder %s25, 0
      %p93 = por %p91, %p92
      %p94 = scmp.ne.s32.totalorder %s80, %s81
      %p95 = scmp.eq.s32.totalorder %s26, 1
      %p96 = por %p94, %p95
      %p98 = scmp.ne.s32.totalorder %s81, %s97
      %p99 = scmp.eq.s32.totalorder %s26, 0
      %p100 = por %p98, %p99
      %s101 = ssub.s32 %s20, %s27
      %p102 = scmp.eq.s32.totalorder %s101, 0
      %s104 = sadd.s32 %s103, 1
      %s105 = scalar_select %p102, %s103, %s104
      %p108 = pneg %p102
      %p109 = scmp.eq.s32.totalorder %s20, 1
      %p110 = por %p108, %p109
      %p111 = scmp.ne.s32.totalorder %s103, %s106
      %p112 = scmp.eq.s32.totalorder %s20, 0
      %p113 = por %p111, %p112
      %p114 = scmp.ne.s32.totalorder %s103, %s106
      %p115 = scmp.eq.s32.totalorder %s25, 1
      %p116 = por %p114, %p115
      %p117 = scmp.ne.s32.totalorder %s106, %s107
      %p118 = scmp.eq.s32.totalorder %s25, 0
      %p119 = por %p117, %p118
      %p120 = scmp.ne.s32.totalorder %s106, %s107
      %p121 = scmp.eq.s32.totalorder %s26, 1
      %p122 = por %p120, %p121
      %p124 = scmp.ne.s32.totalorder %s107, %s123
      %p125 = scmp.eq.s32.totalorder %s26, 0
      %p126 = por %p124, %p125
      %p127 = scmp.le.s32.totalorder 1, %s20
      %p128 = scmp.lt.s32.totalorder %s20, 3
      %p129 = pnand %p127, %p128
      %p130 = pneg %p129
      // Predicated region
      $region9: #{tpu_custom_call.1} parent=5 // pred_check
        _
      $region10: #{tpu_custom_call.1} parent=5 // pred_check_branch
        %132 = sbr.rel (%p129) target = $region12
      $region11: #{tpu_custom_call.1} parent=5 // pred_region
        %s133 = ssub.s32 %s20, 1
        // Predicated region
        $region13: #{tpu_custom_call.1} parent=11 // pred_check
          %p134 = pneg %p67
        $region14: #{tpu_custom_call.1} parent=11 // pred_check_branch
          %136 = sbr.rel (%p134) target = $region16
        $region15: #{tpu_custom_call.1} parent=11 // pred_region
          %s138 = ssub.s32 128, 128
          %139 = vsyncadd [#allocation6], %s138
          %s141 = sshll.u32 [#allocation5], 4
          %s142 = int_to_ptr.vmem [resolvable:$true] %s141
          %144 = dma.hbm_to_vmem [thread:$0]  %s1, 128, %s142, [#allocation6]
        $region16: #{tpu_custom_call.1} parent=11 // pred_fallthru
          _
      $region12: #{tpu_custom_call.1} parent=5 // pred_fallthru
        _
      %p145 = scmp.lt.s32.totalorder %s20, 2
      // Predicated region
      $region17: #{tpu_custom_call.1} parent=5 // pred_check
        %p146 = pneg %p145
      $region18: #{tpu_custom_call.1} parent=5 // pred_check_branch
        %148 = sbr.rel (%p146) target = $region20
      $region19: #{tpu_custom_call.1} parent=5 // pred_region
        // Predicated region
        $region21: #{tpu_custom_call.1} parent=19 // pred_check
          %p149 = pneg %p40
        $region22: #{tpu_custom_call.1} parent=19 // pred_check_branch
          %151 = sbr.rel (%p149) target = $region24
        $region23: #{tpu_custom_call.1} parent=19 // pred_region
          %s152 = sand.u32 %s30, 1
          %s153 = scalar_lea.sflag [#allocation3], %s152
          %s154 = sand.u32 %s30, 1
          %s155 = smul.addr %s154, 4
          %s156 = scalar_lea.vmem [#allocation2], %s155
          %s158 = ssub.s32 64, 64
          %159 = vsyncadd %s153, %s158
          %s160 = smul.addr %s20, 64
          %s161 = scalar_lea.hbm %s0, %s160
          %s163 = sshll.u32 %s156, 4
          %s164 = int_to_ptr.vmem [resolvable:$true] %s163
          %166 = dma.hbm_to_vmem [thread:$0]  %s161, 64, %s164, %s153
        $region24: #{tpu_custom_call.1} parent=19 // pred_fallthru
          _
      $region20: #{tpu_custom_call.1} parent=5 // pred_fallthru
        _
      %p167 = scmp.le.s32.totalorder 1, %s20
      %p168 = scmp.lt.s32.totalorder %s20, 3
      %p169 = pnand %p167, %p168
      %p170 = pneg %p169
      // Predicated region
      $region25: #{tpu_custom_call.1} parent=5 // pred_check
        _
      $region26: #{tpu_custom_call.1} parent=5 // pred_check_branch
        %172 = sbr.rel (%p169) target = $region28
      $region27: #{tpu_custom_call.1} parent=5 // pred_region
        %s173 = ssub.s32 %s20, 1
        %s174 = sand.u32 %s33, 1
        %s175 = scalar_lea.sflag [#allocation3], %s174
        %s176 = sand.u32 %s33, 1
        %s177 = smul.addr %s176, 4
        %s178 = scalar_lea.vmem [#allocation2], %s177
        // Predicated region
        $region29: #{tpu_custom_call.1} parent=27 // pred_check
          %p179 = pneg %p46
        $region30: #{tpu_custom_call.1} parent=27 // pred_check_branch
          %181 = sbr.rel (%p179) target = $region32
        $region31: #{tpu_custom_call.1} parent=27 // pred_region
          %182 = dma.done %s175, 64
        $region32: #{tpu_custom_call.1} parent=27 // pred_fallthru
          _
        // Predicated region
        $region33: #{tpu_custom_call.1} parent=27 // pred_check
          %p183 = pneg %p67
        $region34: #{tpu_custom_call.1} parent=27 // pred_check_branch
          %185 = sbr.rel (%p183) target = $region36
        $region35: #{tpu_custom_call.1} parent=27 // pred_region
          %186 = dma.done [#allocation6], 128
        $region36: #{tpu_custom_call.1} parent=27 // pred_fallthru
          _
        %s187 = sand.u32 %s33, 1
        %s188 = scalar_lea.sflag [#allocation3], %s187
        %s189 = sand.u32 %s33, 1
        %s190 = smul.addr %s189, 4
        %s191 = scalar_lea.vmem [#allocation2], %s190
        %p192 = pneg %p46
        %p193 = pneg %p43
        %p194 = pneg %p67
        %p195 = pneg %p64
        %p196 = pneg %p93
        %p197 = pneg %p90
        %s198 = sand.u32 %s80, 1
        %s199 = scalar_lea.sflag [#allocation4], %s198
        %s200 = sand.u32 %s80, 1
        %s201 = smul.addr %s200, 8
        %s202 = scalar_lea.vmem [#allocation7], %s201
        %p203 = pneg %p119
        %p204 = pneg %p116
        %s205 = sand.u32 %s106, 1
        %s206 = scalar_lea.sflag [#allocation9], %s205
        %s207 = sand.u32 %s106, 1
        %s208 = smul.addr %s207, 2
        %s209 = scalar_lea.vmem [#allocation8], %s208
        %v210 = vld [vmem:[%s178] sm:$0xf]
        %v211 = vld [vmem:[#allocation5] sm:$0xff]
        %v212 = vmul.f32 %v211, 0.5
        %v214 = vrot.slane %v212, 6
        %v215 = vrot.slane %v214, 4
        %v217 = vsub.f32 %v211, %v215
        %v218 = vadd.f32 %v211, %v215
        %220 = vset.pattern.permute.xlu0 2
        %221 = vperm.xlu0 %220, %v210
        %v222 = vpop.permute.xlu0 %221
        %v225 = vlaneseq
        %v226 = vshrl.u32 %v225, 7
        %v227 = vsub.s32 0, %v226
        %v228 = vrot.slane %v218, %v227
        %v229 = vlaneseq
        %v230 = vshrl.u32 %v229, 7
        %v231 = vsub.s32 4, %v230
        %v232 = vrot.slane %v218, %v231
        %v235 = vlaneseq
        %v236 = vshrl.u32 %v235, 7
        %v237 = vsub.s32 0, %v236
        %v238 = vrot.slane %v228, %v237
        %v239 = vlaneseq
        %v240 = vshrl.u32 %v239, 7
        %v241 = vsub.s32 0, %v240
        %v242 = vrot.slane %v232, %v241
        %v243 = vmin.f32 %v222, %v238
        %v244 = vmin.f32 %v222, %v242
        %245 = vset.pattern.permute.xlu0 0
        %246 = vperm.xlu0 %245, %v210
        %v247 = vpop.permute.xlu0 %246
        %v250 = vlaneseq
        %v251 = vshrl.u32 %v250, 7
        %v252 = vsub.s32 0, %v251
        %v253 = vrot.slane %v217, %v252
        %v254 = vlaneseq
        %v255 = vshrl.u32 %v254, 7
        %v256 = vsub.s32 4, %v255
        %v257 = vrot.slane %v217, %v256
        %v260 = vlaneseq
        %v261 = vshrl.u32 %v260, 7
        %v262 = vsub.s32 0, %v261
        %v263 = vrot.slane %v253, %v262
        %v264 = vlaneseq
        %v265 = vshrl.u32 %v264, 7
        %v266 = vsub.s32 0, %v265
        %v267 = vrot.slane %v257, %v266
        %v268 = vmax.f32 %v247, %v263
        %v269 = vmax.f32 %v247, %v267
        %v270 = vsub.f32 %v243, %v268
        %v271 = vsub.f32 %v244, %v269
        %v272 = vmax.f32 %v270, 0.0
        %v273 = vmax.f32 %v271, 0.0
        %274 = vset.pattern.permute.xlu0 3
        %275 = vperm.xlu0 %274, %v210
        %v276 = vpop.permute.xlu0 %275
        %v278 = vlaneseq
        %v279 = vshrl.u32 %v278, 7
        %v280 = vsub.s32 1, %v279
        %v281 = vrot.slane %v218, %v280
        %v282 = vlaneseq
        %v283 = vshrl.u32 %v282, 7
        %v284 = vsub.s32 5, %v283
        %v285 = vrot.slane %v218, %v284
        %v288 = vlaneseq
        %v289 = vshrl.u32 %v288, 7
        %v290 = vsub.s32 1, %v289
        %v291 = vrot.slane %v281, %v290
        %v292 = vlaneseq
        %v293 = vshrl.u32 %v292, 7
        %v294 = vsub.s32 1, %v293
        %v295 = vrot.slane %v285, %v294
        %v296 = vmin.f32 %v276, %v291
        %v297 = vmin.f32 %v276, %v295
        %298 = vset.pattern.permute.xlu0 1
        %299 = vperm.xlu0 %298, %v210
        %v300 = vpop.permute.xlu0 %299
        %v302 = vlaneseq
        %v303 = vshrl.u32 %v302, 7
        %v304 = vsub.s32 1, %v303
        %v305 = vrot.slane %v217, %v304
        %v306 = vlaneseq
        %v307 = vshrl.u32 %v306, 7
        %v308 = vsub.s32 5, %v307
        %v309 = vrot.slane %v217, %v308
        %v312 = vlaneseq
        %v313 = vshrl.u32 %v312, 7
        %v314 = vsub.s32 1, %v313
        %v315 = vrot.slane %v305, %v314
        %v316 = vlaneseq
        %v317 = vshrl.u32 %v316, 7
        %v318 = vsub.s32 1, %v317
        %v319 = vrot.slane %v309, %v318
        %v320 = vmax.f32 %v300, %v315
        %v321 = vmax.f32 %v300, %v319
        %v322 = vsub.f32 %v296, %v320
        %v323 = vsub.f32 %v297, %v321
        %v324 = vmax.f32 %v322, 0.0
        %v325 = vmax.f32 %v323, 0.0
        %v326 = vmul.f32 %v272, %v324
        %v327 = vmul.f32 %v273, %v325
        %328 = vrot.lane.b32.xlu0 %v210, 2
        %v329 = vpop.permute.xlu0 %328
        %v331 = vsub.f32 %v210, %v329
        %333 = vrot.lane.b32.xlu0 %v331, 127
        %v334 = vpop.permute.xlu0 %333
        %v336 = vmul.f32 %v331, %v334
        %v337 = vsub.f32 %v218, %v217
        %v339 = vrot.slane %v337, 5
        %v340 = vrot.slane %v339, 4
        %v342 = vmul.f32 %v337, %v340
        %344 = vset.pattern.permute.xlu0 2
        %345 = vperm.xlu0 %344, %v336
        %v346 = vpop.permute.xlu0 %345
        %v349 = vlaneseq
        %v350 = vshrl.u32 %v349, 7
        %v351 = vsub.s32 0, %v350
        %v352 = vrot.slane %v342, %v351
        %v353 = vlaneseq
        %v354 = vshrl.u32 %v353, 7
        %v355 = vsub.s32 4, %v354
        %v356 = vrot.slane %v342, %v355
        %v359 = vlaneseq
        %v360 = vshrl.u32 %v359, 7
        %v361 = vsub.s32 0, %v360
        %v362 = vrot.slane %v352, %v361
        %v363 = vlaneseq
        %v364 = vshrl.u32 %v363, 7
        %v365 = vsub.s32 0, %v364
        %v366 = vrot.slane %v356, %v365
        %v367 = vadd.f32 %v346, %v362
        %v368 = vadd.f32 %v346, %v366
        %v369 = vsub.f32 %v367, %v326
        %v370 = vsub.f32 %v368, %v327
        %v371 = vrcp.pop %v369
        %v372 = vmul.f32 %v326, %v371
        %v373 = vrcp.pop %v370
        %v374 = vmul.f32 %v327, %v373
        %v375 = vlaneseq
        %v376 = vand.u32 %v375, 127
        %v377 = vadd.s32 %v376, 128
        %v378 = vlaneseq
        %v379 = vshrl.u32 %v378, 7
        %vm380 = vcmask 1043456
        %v381 = vsel %vm380, %v372, -inf
        %v382 = vsel %vm380, %v374, -inf
        %v383 = vmax.f32 %v381, %v382
        %384 = vmax.xlane.f32.xlu0 %v383
        %v385 = vpop.xlane.xlu0 %384
        %vm386 = vcmp.eq.f32.partialorder %v372, %v385
        %vm387 = vcmp.eq.f32.partialorder %v374, %v385
        %v388 = vsel %vm386, %v376, 256
        %v389 = vsel %vm387, %v377, 256
        %v390 = vsel %vm380, %v388, 2147483647
        %v391 = vsel %vm380, %v389, 2147483647
        %vm392 = vcmp.lt.s32.totalorder %v390, %v391
        %v393 = vsel %vm392, %v390, %v391
        %v394 = vand.u32 %v393, 65535
        %v395 = vshra.s32 %v393, 16
        %v396 = vcvt.s32.f32 %v394
        %v397 = vcvt.s32.f32 %v395
        %398 = vmin.xlane.f32.xlu0 %v397
        %v399 = vpop.xlane.xlu0 %398
        %vm400 = vcmp.eq.f32.partialorder %v397, %v399
        %v401 = vsel %vm400, %v396, inf
        %402 = vmin.xlane.f32.xlu0 %v401
        %v403 = vpop.xlane.xlu0 %402
        %v404 = vcvt.f32.s32 %v403
        %v405 = vcvt.f32.s32 %v399
        %v406 = vshll.u32 %v405, 16
        %v407 = vadd.s32 %v406, %v404
        %v408 = vrot.slane %v381, 4
        %v409 = vmax.f32 %v381, %v408
        %v410 = vrot.slane %v409, 2
        %v411 = vmax.f32 %v409, %v410
        %v412 = vrot.slane %v411, 1
        %v413 = vmax.f32 %v411, %v412
        %v414 = vrot.slane %v382, 4
        %v415 = vmax.f32 %v382, %v414
        %v416 = vrot.slane %v415, 2
        %v417 = vmax.f32 %v415, %v416
        %v418 = vrot.slane %v417, 1
        %v419 = vmax.f32 %v417, %v418
        %vm420 = vcmp.eq.f32.partialorder %v372, %v413
        %vm421 = vcmp.eq.f32.partialorder %v374, %v419
        %v422 = vsel %vm420, %v379, 4
        %v423 = vsel %vm421, %v379, 4
        %v424 = vsel %vm380, %v422, 2147483647
        %v425 = vrot.slane %v424, 4
        %vm426 = vcmp.lt.s32.totalorder %v424, %v425
        %v427 = vsel %vm426, %v424, %v425
        %v428 = vrot.slane %v427, 2
        %vm429 = vcmp.lt.s32.totalorder %v427, %v428
        %v430 = vsel %vm429, %v427, %v428
        %v431 = vrot.slane %v430, 1
        %vm432 = vcmp.lt.s32.totalorder %v430, %v431
        %v433 = vsel %vm432, %v430, %v431
        %v434 = vsel %vm380, %v423, 2147483647
        %v435 = vrot.slane %v434, 4
        %vm436 = vcmp.lt.s32.totalorder %v434, %v435
        %v437 = vsel %vm436, %v434, %v435
        %v438 = vrot.slane %v437, 2
        %vm439 = vcmp.lt.s32.totalorder %v437, %v438
        %v440 = vsel %vm439, %v437, %v438
        %v441 = vrot.slane %v440, 1
        %vm442 = vcmp.lt.s32.totalorder %v440, %v441
        %v443 = vsel %vm442, %v440, %v441
        %vm444 = vcmp.eq.s32.totalorder %v376, %v407
        %vm445 = vcmp.eq.s32.totalorder %v377, %v407
        %v446 = vsel %vm444, 1, 0
        %v447 = vsel %vm445, 1, 0
        %v448 = vsel %vm380, %v446, 2147483648
        %v449 = vrot.slane %v448, 4
        %vm450 = vcmp.gt.s32.totalorder %v448, %v449
        %v451 = vsel %vm450, %v448, %v449
        %v452 = vrot.slane %v451, 2
        %vm453 = vcmp.gt.s32.totalorder %v451, %v452
        %v454 = vsel %vm453, %v451, %v452
        %v455 = vrot.slane %v454, 1
        %vm456 = vcmp.gt.s32.totalorder %v454, %v455
        %v457 = vsel %vm456, %v454, %v455
        %v458 = vsel %vm380, %v447, 2147483648
        %v459 = vrot.slane %v458, 4
        %vm460 = vcmp.gt.s32.totalorder %v458, %v459
        %v461 = vsel %vm460, %v458, %v459
        %v462 = vrot.slane %v461, 2
        %vm463 = vcmp.gt.s32.totalorder %v461, %v462
        %v464 = vsel %vm463, %v461, %v462
        %v465 = vrot.slane %v464, 1
        %vm466 = vcmp.gt.s32.totalorder %v464, %v465
        %v467 = vsel %vm466, %v464, %v465
        %vm468 = vcmp.gt.s32.totalorder %v457, 0
        %vm469 = vcmp.gt.s32.totalorder %v467, 0
        %v470 = vsel %vm444, %v379, 4294967295
        %v471 = vsel %vm445, %v379, 4294967295
        %v472 = vsel %vm380, %v470, 2147483648
        %v473 = vrot.slane %v472, 4
        %vm474 = vcmp.gt.s32.totalorder %v472, %v473
        %v475 = vsel %vm474, %v472, %v473
        %v476 = vrot.slane %v475, 2
        %vm477 = vcmp.gt.s32.totalorder %v475, %v476
        %v478 = vsel %vm477, %v475, %v476
        %v479 = vrot.slane %v478, 1
        %vm480 = vcmp.gt.s32.totalorder %v478, %v479
        %v481 = vsel %vm480, %v478, %v479
        %v482 = vsel %vm380, %v471, 2147483648
        %v483 = vrot.slane %v482, 4
        %vm484 = vcmp.gt.s32.totalorder %v482, %v483
        %v485 = vsel %vm484, %v482, %v483
        %v486 = vrot.slane %v485, 2
        %vm487 = vcmp.gt.s32.totalorder %v485, %v486
        %v488 = vsel %vm487, %v485, %v486
        %v489 = vrot.slane %v488, 1
        %vm490 = vcmp.gt.s32.totalorder %v488, %v489
        %v491 = vsel %vm490, %v488, %v489
        %v492 = vsel %vm468, 2.0, %v413
        %v493 = vsel %vm469, 2.0, %v419
        %v494 = vsel %vm468, %v481, %v433
        %v495 = vsel %vm469, %v491, %v443
        %vm496 = vcmp.eq.s32.totalorder %v379, %v494
        %vm497 = vcmp.eq.s32.totalorder %v379, %v495
        %v498 = vsel %vm496, %v247, 0.0
        %v499 = vsel %vm497, %v247, 0.0
        %v500 = vsel %vm380, %v498, 0.0
        %v501 = vrot.slane %v500, 4
        %v502 = vadd.f32 %v500, %v501
        %v503 = vrot.slane %v502, 2
        %v504 = vadd.f32 %v502, %v503
        %v505 = vrot.slane %v504, 1
        %v506 = vadd.f32 %v504, %v505
        %v507 = vsel %vm380, %v499, 0.0
        %v508 = vrot.slane %v507, 4
        %v509 = vadd.f32 %v507, %v508
        %v510 = vrot.slane %v509, 2
        %v511 = vadd.f32 %v509, %v510
        %v512 = vrot.slane %v511, 1
        %v513 = vadd.f32 %v511, %v512
        %v514 = vsel %vm496, %v300, 0.0
        %v515 = vsel %vm497, %v300, 0.0
        %v516 = vsel %vm380, %v514, 0.0
        %v517 = vrot.slane %v516, 4
        %v518 = vadd.f32 %v516, %v517
        %v519 = vrot.slane %v518, 2
        %v520 = vadd.f32 %v518, %v519
        %v521 = vrot.slane %v520, 1
        %v522 = vadd.f32 %v520, %v521
        %v523 = vsel %vm380, %v515, 0.0
        %v524 = vrot.slane %v523, 4
        %v525 = vadd.f32 %v523, %v524
        %v526 = vrot.slane %v525, 2
        %v527 = vadd.f32 %v525, %v526
        %v528 = vrot.slane %v527, 1
        %v529 = vadd.f32 %v527, %v528
        %v530 = vsel %vm496, %v222, 0.0
        %v531 = vsel %vm497, %v222, 0.0
        %v532 = vsel %vm380, %v530, 0.0
        %v533 = vrot.slane %v532, 4
        %v534 = vadd.f32 %v532, %v533
        %v535 = vrot.slane %v534, 2
        %v536 = vadd.f32 %v534, %v535
        %v537 = vrot.slane %v536, 1
        %v538 = vadd.f32 %v536, %v537
        %v539 = vsel %vm380, %v531, 0.0
        %v540 = vrot.slane %v539, 4
        %v541 = vadd.f32 %v539, %v540
        %v542 = vrot.slane %v541, 2
        %v543 = vadd.f32 %v541, %v542
        %v544 = vrot.slane %v543, 1
        %v545 = vadd.f32 %v543, %v544
        %v546 = vsel %vm496, %v276, 0.0
        %v547 = vsel %vm497, %v276, 0.0
        %v548 = vsel %vm380, %v546, 0.0
        %v549 = vrot.slane %v548, 4
        %v550 = vadd.f32 %v548, %v549
        %v551 = vrot.slane %v550, 2
        %v552 = vadd.f32 %v550, %v551
        %v553 = vrot.slane %v552, 1
        %v554 = vadd.f32 %v552, %v553
        %v555 = vsel %vm380, %v547, 0.0
        %v556 = vrot.slane %v555, 4
        %v557 = vadd.f32 %v555, %v556
        %v558 = vrot.slane %v557, 2
        %v559 = vadd.f32 %v557, %v558
        %v560 = vrot.slane %v559, 1
        %v561 = vadd.f32 %v559, %v560
        %562 = vset.pattern.permute.xlu0 4
        %563 = vperm.xlu0 %562, %v210
        %v564 = vpop.permute.xlu0 %563
        %v566 = vsel %vm496, %v564, 0.0
        %v567 = vsel %vm497, %v564, 0.0
        %v568 = vsel %vm380, %v566, 0.0
        %v569 = vrot.slane %v568, 4
        %v570 = vadd.f32 %v568, %v569
        %v571 = vrot.slane %v570, 2
        %v572 = vadd.f32 %v570, %v571
        %v573 = vrot.slane %v572, 1
        %v574 = vadd.f32 %v572, %v573
        %v575 = vsel %vm380, %v567, 0.0
        %v576 = vrot.slane %v575, 4
        %v577 = vadd.f32 %v575, %v576
        %v578 = vrot.slane %v577, 2
        %v579 = vadd.f32 %v577, %v578
        %v580 = vrot.slane %v579, 1
        %v581 = vadd.f32 %v579, %v580
        %v582 = vadd.f32 %v574, 1.0
        %v583 = vadd.f32 %v581, 1.0
        %v584 = vcvt.f32.s32.to.zero.pseudo %v582
        %v585 = vcvt.f32.s32.to.zero.pseudo %v583
        %vm586 = vcmp.lt.f32.partialorder %v492, 0.5
        %vm587 = vcmp.lt.f32.partialorder %v493, 0.5
        %v588 = vsel %vm586, 0, %v584
        %v589 = vsel %vm587, 0, %v585
        %v590 = vcombine.low %v588, %v589
        %v592 = vunpack.c.l.s4 1966171168
        %v593 = vunpack.c.0.s8 %v592
        %v594 = vlaneseq
        %v595 = vshrl.u32 %v594, 7
        %v596 = vsub.s32 %v593, %v595
        %v597 = vrot.slane %v590, %v596
        %v599 = vunpack.c.l.s4 1966171168
        %v600 = vunpack.c.0.s8 %v599
        %v601 = vlaneseq
        %v602 = vshrl.u32 %v601, 7
        %v603 = vsub.s32 %v600, %v602
        %v604 = vrot.slane %v597, %v603
        %v605 = vlaneseq
        %vm606 = vcmp.ge.s32.totalorder %v605, 0
        %vm607 = vcmp.lt.s32.totalorder %v605, 256
        %vm608 = vmand %vm606, %vm607
        %609 = vst.msk [vmem:[%s209] sm:$0x3] %vm608, %v604
        %v610 = vadd.f32 %v506, %v538
        %v611 = vadd.f32 %v513, %v545
        %v612 = vmul.f32 %v610, 0.5
        %v613 = vmul.f32 %v611, 0.5
        %v615 = vlaneseq
        %v616 = vshrl.u32 %v615, 7
        %v617 = vsub.s32 0, %v616
        %v618 = vrot.slane %v211, %v617
        %v619 = vlaneseq
        %v620 = vshrl.u32 %v619, 7
        %v621 = vsub.s32 4, %v620
        %v622 = vrot.slane %v211, %v621
        %v625 = vsub.f32 %v612, %v618
        %v626 = vsub.f32 %v613, %v622
        %v627 = vmul.f32 %v211, 0.1
        %v629 = vlaneseq
        %v630 = vshrl.u32 %v629, 7
        %v631 = vsub.s32 2, %v630
        %v632 = vrot.slane %v627, %v631
        %v633 = vlaneseq
        %v634 = vshrl.u32 %v633, 7
        %v635 = vsub.s32 6, %v634
        %v636 = vrot.slane %v627, %v635
        %v639 = vrcp.pop %v632
        %v640 = vmul.f32 %v625, %v639
        %v641 = vrcp.pop %v636
        %v642 = vmul.f32 %v626, %v641
        %v643 = vadd.f32 %v522, %v554
        %v644 = vadd.f32 %v529, %v561
        %v645 = vmul.f32 %v643, 0.5
        %v646 = vmul.f32 %v644, 0.5
        %v647 = vlaneseq
        %v648 = vshrl.u32 %v647, 7
        %v649 = vsub.s32 1, %v648
        %v650 = vrot.slane %v211, %v649
        %v651 = vlaneseq
        %v652 = vshrl.u32 %v651, 7
        %v653 = vsub.s32 5, %v652
        %v654 = vrot.slane %v211, %v653
        %v657 = vsub.f32 %v645, %v650
        %v658 = vsub.f32 %v646, %v654
        %v659 = vlaneseq
        %v660 = vshrl.u32 %v659, 7
        %v661 = vsub.s32 3, %v660
        %v662 = vrot.slane %v627, %v661
        %v663 = vlaneseq
        %v664 = vshrl.u32 %v663, 7
        %v665 = vsub.s32 7, %v664
        %v666 = vrot.slane %v627, %v665
        %v669 = vrcp.pop %v662
        %v670 = vmul.f32 %v657, %v669
        %v671 = vrcp.pop %v666
        %v672 = vmul.f32 %v658, %v671
        %v673 = vsub.f32 %v538, %v506
        %v674 = vsub.f32 %v545, %v513
        %v675 = vlaneseq
        %v676 = vshrl.u32 %v675, 7
        %v677 = vsub.s32 2, %v676
        %v678 = vrot.slane %v211, %v677
        %v679 = vlaneseq
        %v680 = vshrl.u32 %v679, 7
        %v681 = vsub.s32 6, %v680
        %v682 = vrot.slane %v211, %v681
        %v685 = vrcp.pop %v678
        %v686 = vmul.f32 %v673, %v685
        %v687 = vrcp.pop %v682
        %v688 = vmul.f32 %v674, %v687
        %v689 = vlog2.pop %v686
        %v690 = vmul.f32 %v689, 0.6931472
        %v691 = vlog2.pop %v688
        %v692 = vmul.f32 %v691, 0.6931472
        %v693 = vrcp.pop 0.2
        %v694 = vmul.f32 %v690, %v693
        %v695 = vmul.f32 %v692, %v693
        %v696 = vsub.f32 %v554, %v522
        %v697 = vsub.f32 %v561, %v529
        %v698 = vlaneseq
        %v699 = vshrl.u32 %v698, 7
        %v700 = vsub.s32 3, %v699
        %v701 = vrot.slane %v211, %v700
        %v702 = vlaneseq
        %v703 = vshrl.u32 %v702, 7
        %v704 = vsub.s32 7, %v703
        %v705 = vrot.slane %v211, %v704
        %v708 = vrcp.pop %v701
        %v709 = vmul.f32 %v696, %v708
        %v710 = vrcp.pop %v705
        %v711 = vmul.f32 %v697, %v710
        %v712 = vlog2.pop %v709
        %v713 = vmul.f32 %v712, 0.6931472
        %v714 = vlog2.pop %v711
        %v715 = vmul.f32 %v714, 0.6931472
        %v716 = vmul.f32 %v713, %v693
        %v717 = vmul.f32 %v715, %v693
        %v720 = vcombine.low %v640, %v642
        %v722 = vunpack.c.l.s4 1966171168
        %v723 = vunpack.c.0.s8 %v722
        %v724 = vlaneseq
        %v725 = vshrl.u32 %v724, 7
        %v726 = vsub.s32 %v723, %v725
        %v727 = vrot.slane %v720, %v726
        %v729 = vunpack.c.l.s4 1966171168
        %v730 = vunpack.c.0.s8 %v729
        %v731 = vlaneseq
        %v732 = vshrl.u32 %v731, 7
        %v733 = vsub.s32 %v730, %v732
        %v734 = vrot.slane %v727, %v733
        %736 = vst.msk [vmem:[%s202] ss:$4 sm:$0x3] %vm608, %v734
        %v739 = vcombine.low %v670, %v672
        %v741 = vunpack.c.l.s4 1966171168
        %v742 = vunpack.c.0.s8 %v741
        %v743 = vlaneseq
        %v744 = vshrl.u32 %v743, 7
        %v745 = vsub.s32 %v742, %v744
        %v746 = vrot.slane %v739, %v745
        %v748 = vunpack.c.l.s4 1966171168
        %v749 = vunpack.c.0.s8 %v748
        %v750 = vlaneseq
        %v751 = vshrl.u32 %v750, 7
        %v752 = vsub.s32 %v749, %v751
        %v753 = vrot.slane %v746, %v752
        %s755 = scalar_lea.vmem %s202, 1 [#allocation7]
        %756 = vst.msk [vmem:[%s755] ss:$4 sm:$0x3] %vm608, %v753
        %v759 = vcombine.low %v694, %v695
        %v761 = vunpack.c.l.s4 1966171168
        %v762 = vunpack.c.0.s8 %v761
        %v763 = vlaneseq
        %v764 = vshrl.u32 %v763, 7
        %v765 = vsub.s32 %v762, %v764
        %v766 = vrot.slane %v759, %v765
        %v768 = vunpack.c.l.s4 1966171168
        %v769 = vunpack.c.0.s8 %v768
        %v770 = vlaneseq
        %v771 = vshrl.u32 %v770, 7
        %v772 = vsub.s32 %v769, %v771
        %v773 = vrot.slane %v766, %v772
        %s775 = scalar_lea.vmem %s202, 2 [#allocation7]
        %776 = vst.msk [vmem:[%s775] ss:$4 sm:$0x3] %vm608, %v773
        %v779 = vcombine.low %v716, %v717
        %v781 = vunpack.c.l.s4 1966171168
        %v782 = vunpack.c.0.s8 %v781
        %v783 = vlaneseq
        %v784 = vshrl.u32 %v783, 7
        %v785 = vsub.s32 %v782, %v784
        %v786 = vrot.slane %v779, %v785
        %v788 = vunpack.c.l.s4 1966171168
        %v789 = vunpack.c.0.s8 %v788
        %v790 = vlaneseq
        %v791 = vshrl.u32 %v790, 7
        %v792 = vsub.s32 %v789, %v791
        %v793 = vrot.slane %v786, %v792
        %s795 = scalar_lea.vmem %s202, 3 [#allocation7]
        %796 = vst.msk [vmem:[%s795] ss:$4 sm:$0x3] %vm608, %v793
        %s797 = sand.u32 %s80, 1
        %s798 = scalar_lea.sflag [#allocation4], %s797
        %s799 = sand.u32 %s80, 1
        %s800 = smul.addr %s799, 8
        %s801 = scalar_lea.vmem [#allocation7], %s800
        %s802 = sand.u32 %s106, 1
        %s803 = scalar_lea.sflag [#allocation9], %s802
        %s804 = sand.u32 %s106, 1
        %s805 = smul.addr %s804, 2
        %s806 = scalar_lea.vmem [#allocation8], %s805
        // Predicated region
        $region37: #{tpu_custom_call.1} parent=27 // pred_check
          %p807 = pneg %p90
        $region38: #{tpu_custom_call.1} parent=27 // pred_check_branch
          %809 = sbr.rel (%p807) target = $region40
        $region39: #{tpu_custom_call.1} parent=27 // pred_region
          %s811 = ssub.s32 128, 128
          %812 = vsyncadd %s798, %s811
          %s813 = smul.addr %s25, 2
          %s814 = smul.addr %s813, 64
          %s815 = scalar_lea.hbm %s2, %s814
          %s817 = sshll.u32 %s801, 4
          %s818 = int_to_ptr.vmem [resolvable:$true] %s817
          %820 = dma.vmem_to_hbm [thread:$0]  %s818, 128, %s815, %s798
        $region40: #{tpu_custom_call.1} parent=27 // pred_fallthru
          _
        // Predicated region
        $region41: #{tpu_custom_call.1} parent=27 // pred_check
          %p821 = pneg %p116
        $region42: #{tpu_custom_call.1} parent=27 // pred_check_branch
          %823 = sbr.rel (%p821) target = $region44
        $region43: #{tpu_custom_call.1} parent=27 // pred_region
          %s825 = ssub.s32 32, 32
          %826 = vsyncadd %s803, %s825
          %s827 = smul.addr %s25, 2
          %s828 = smul.addr %s827, 16
          %s829 = scalar_lea.hbm %s3, %s828
          %s831 = sshll.u32 %s806, 4
          %s832 = int_to_ptr.vmem [resolvable:$true] %s831
          %834 = dma.vmem_to_hbm [thread:$0]  %s832, 32, %s829, %s803
        $region44: #{tpu_custom_call.1} parent=27 // pred_fallthru
          _
      $region28: #{tpu_custom_call.1} parent=5 // pred_fallthru
        _
      %p835 = scmp.le.s32.totalorder 2, %s20
      // Predicated region
      $region45: #{tpu_custom_call.1} parent=5 // pred_check
        %p836 = pneg %p835
      $region46: #{tpu_custom_call.1} parent=5 // pred_check_branch
        %838 = sbr.rel (%p836) target = $region48
      $region47: #{tpu_custom_call.1} parent=5 // pred_region
        %s839 = ssub.s32 %s20, 2
        // Predicated region
        $region49: #{tpu_custom_call.1} parent=47 // pred_check
          %p840 = pneg %p96
        $region50: #{tpu_custom_call.1} parent=47 // pred_check_branch
          %842 = sbr.rel (%p840) target = $region52
        $region51: #{tpu_custom_call.1} parent=47 // pred_region
          %s843 = sand.u32 %s81, 1
          %s844 = scalar_lea.sflag [#allocation4], %s843
          %s845 = sand.u32 %s81, 1
          %s846 = smul.addr %s845, 8
          %s847 = scalar_lea.vmem [#allocation7], %s846
          %848 = dma.done %s844, 128
        $region52: #{tpu_custom_call.1} parent=47 // pred_fallthru
          _
        // Predicated region
        $region53: #{tpu_custom_call.1} parent=47 // pred_check
          %p849 = pneg %p122
        $region54: #{tpu_custom_call.1} parent=47 // pred_check_branch
          %851 = sbr.rel (%p849) target = $region56
        $region55: #{tpu_custom_call.1} parent=47 // pred_region
          %s852 = sand.u32 %s107, 1
          %s853 = scalar_lea.sflag [#allocation9], %s852
          %s854 = sand.u32 %s107, 1
          %s855 = smul.addr %s854, 2
          %s856 = scalar_lea.vmem [#allocation8], %s855
          %857 = dma.done %s853, 32
        $region56: #{tpu_custom_call.1} parent=47 // pred_fallthru
          _
      $region48: #{tpu_custom_call.1} parent=5 // pred_fallthru
        _
    $region6: #{tpu_custom_call.1} parent=1 // loop_footer
      %s24 = sadd.s32 1, %s20
    $region7: #{tpu_custom_call.1} parent=1 // loop_footer_branch
      %19 = sbr.rel target = $region3
    $region8: #{tpu_custom_call.1} parent=1 // loop_exit
      _
    %858 = vsyncpa [#allocation3], 1
    %s859 = scalar_lea.sflag [#allocation3], 1
    %860 = vsyncpa %s859, 1
    %861 = vsyncpa [#allocation6], 1
    %862 = vsyncpa [#allocation4], 1
    %s863 = scalar_lea.sflag [#allocation4], 1
    %864 = vsyncpa %s863, 1
    %865 = vsyncpa [#allocation9], 1
    %s866 = scalar_lea.sflag [#allocation9], 1
    %867 = vsyncpa %s866, 1

</llo_original>
